<compile_context>
chip_gen: v6e
topology: v6e:2x2x1
jax: 0.10.0
libtpu: 0.0.40
codegen_flags: <defaults>
</compile_context>

<pallas_src>
import functools

import jax
import jax.numpy as jnp
from jax.experimental import pallas as pl
from jax.experimental.pallas import tpu as pltpu


def _round_up(n, m):
    return (n + m - 1) // m * m


def _policy_kernel(x_ref, c_ref, cadj_ref, nis_ref, w_ref, b_ref, scale_ref, mid_ref,
                   o_ref):
    # x_ref     : (D8, TB)   observation tile, batch on lanes
    # c_ref     : (K, D8)    RBF centers (obs part, zero-padded cols)
    # cadj_ref  : (K, 1)     ||C_obs||^2 + (t - C_time)^2
    # nis_ref   : (K, 1)     -0.5 / |sigma^2|
    # w_ref     : (A, K)
    # b_ref     : (A, 1)
    # scale_ref : (A, 1)     (hi - lo) / 2
    # mid_ref   : (A, 1)     (hi + lo) / 2
    # o_ref     : (A, TB)
    x = x_ref[...]                                                   # (D8, TB)

    x_sq = jnp.sum(x * x, axis=0, keepdims=True)                     # (1, TB)
    xc = jnp.dot(c_ref[...], x, preferred_element_type=jnp.float32)  # (K, TB)

    # r[k, b] = ||x_b - C_k||^2 (with the virtual-time term folded into c_adj).
    r = jnp.maximum(x_sq + cadj_ref[...] - 2.0 * xc, 0.0)            # (K, TB)
    phi = jnp.exp(r * nis_ref[...])                                  # (K, TB)  (EUP)

    out = jnp.dot(w_ref[...], phi,
                  preferred_element_type=jnp.float32) + b_ref[...]   # (A, TB)
    o_ref[...] = scale_ref[...] * jnp.tanh(out) + mid_ref[...]       # (A, TB)


def finite_horizon_policy_forward(obs, params, virtual_t=1.0):
    """obs: (B, obs_dim) float32. Returns action (B, act_dim) float32."""
    obs = obs.astype(jnp.float32)
    B, obs_dim = obs.shape

    C = params["C"].astype(jnp.float32)                  # (K, D), D = obs_dim + 1
    K, D = C.shape
    assert D == obs_dim + 1, "C must include the virtual-time column"
    sigma_sq = params["sigma_square"].astype(jnp.float32).reshape(K)
    w = params["w"].astype(jnp.float32)                  # (A, K)
    A = w.shape[0]
    b = params["b"].astype(jnp.float32).reshape(A, 1)
    act_high = params["act_high_lim"].astype(jnp.float32).reshape(A, 1)
    act_low = params["act_low_lim"].astype(jnp.float32).reshape(A, 1)
    scale = (act_high - act_low) * 0.5                   # (A, 1)
    mid = (act_high + act_low) * 0.5                     # (A, 1)

    # ---- parameter-only precompute (hoisted out of the kernel) ------------------
    C_obs = C[:, :obs_dim]                               # (K, obs_dim)
    c_time = C[:, obs_dim]                               # (K,)
    c_adj = (jnp.sum(C_obs * C_obs, axis=1)
             + (jnp.float32(virtual_t) - c_time) ** 2).reshape(K, 1)        # (K, 1)
    neg_inv_two_sigma = (-0.5 / jnp.abs(sigma_sq)).reshape(K, 1)            # (K, 1)

    # ---- tiling: batch on the lane axis ----------------------------------------
    LANE = 128
    D8 = _round_up(obs_dim, 8)                           # sublane-aligned feature dim
    BP0 = _round_up(B, LANE)
    TB = min(1024, BP0)                                  # lane tile (<=1 MiB/step VMEM)
    BP = _round_up(B, TB)
    grid = (BP // TB,)

    # Feed obs transposed/zero-padded so batch sits on lanes; zeros in the padded
    # rows/cols contribute nothing to x_sq / xc, and padded batch columns stay finite.
    x_t = jnp.pad(obs.T, ((0, D8 - obs_dim), (0, BP - B)))          # (D8, BP)
    C_pad = jnp.pad(C_obs, ((0, 0), (0, D8 - obs_dim)))             # (K, D8)

    const = lambda i: (0, 0)                             # resident parameter blocks
    out = pl.pallas_call(
        _policy_kernel,
        out_shape=jax.ShapeDtypeStruct((A, BP), jnp.float32),
        grid=grid,
        in_specs=[
            pl.BlockSpec((D8, TB), lambda i: (0, i)),    # x_t   (streams with batch)
            pl.BlockSpec((K, D8), const),                # C
            pl.BlockSpec((K, 1), const),                 # c_adj
            pl.BlockSpec((K, 1), const),                 # -0.5 / |sigma^2|
            pl.BlockSpec((A, K), const),                 # w
            pl.BlockSpec((A, 1), const),                 # b
            pl.BlockSpec((A, 1), const),                 # scale
            pl.BlockSpec((A, 1), const),                 # mid
        ],
        out_specs=pl.BlockSpec((A, TB), lambda i: (0, i)),
        compiler_params=pltpu.CompilerParams(
            dimension_semantics=("parallel",)),
    )(x_t, C_pad, c_adj, neg_inv_two_sigma, w, b, scale, mid)

    return out[:, :B].T                                  # (B, A)


def _reference_forward(obs, params, virtual_t=1.0):
    """Pure-JAX reference matching the PyTorch semantics exactly."""
    B = obs.shape[0]
    t_col = jnp.full((B, 1), virtual_t, dtype=jnp.float32)
    x = jnp.concatenate([obs.astype(jnp.float32), t_col], axis=1)   # (B, D)
    C = params["C"]                                                  # (K, D)
    diff = x[:, None, :] - C[None, :, :]                             # (B, K, D)
    r = jnp.sum(diff * diff, axis=-1)                                # (B, K)
    phi = jnp.exp(-r / (2.0 * jnp.abs(params["sigma_square"])))      # (B, K)
    out = phi @ params["w"].T + params["b"]                          # (B, A)
    hi, lo = params["act_high_lim"], params["act_low_lim"]
    return (hi - lo) / 2.0 * jnp.tanh(out) + (hi + lo) / 2.0


if __name__ == "__main__":
    # Small, module-consistent shapes.
    obs_dim = 7          # -> RBF input_dim = obs_dim + 1 = 8
    act_dim = 4
    num_kernel = 16

    key = jax.random.PRNGKey(0)
    k_obs, k_C, k_sig, k_w, k_b, k_obs2 = jax.random.split(key, 6)

    D = obs_dim + 1
    params = {
        # torch: C = randn(1, K, D)  -> stored squeezed as (K, D)
        "C": jax.random.normal(k_C, (num_kernel, D), jnp.float32),
        # torch: sigma_square = |randn(1, K)| + 0.1
        "sigma_square": jnp.abs(jax.random.normal(k_sig, (1, num_kernel), jnp.float32)) + 0.1,
        # torch: w = randn(1, A, K)  -> stored squeezed as (A, K)
        "w": jax.random.normal(k_w, (act_dim, num_kernel), jnp.float32),
        # torch: b = randn(1, A, 1)  -> stored squeezed as (1, A)
        "b": jax.random.normal(k_b, (1, act_dim), jnp.float32),
        # action limits (deterministic)
        "act_high_lim": jnp.full((act_dim,), 2.0, jnp.float32),
        "act_low_lim": jnp.full((act_dim,), -1.0, jnp.float32),
    }

    # Case 1: tiny batch (single tile, padded to 128 lanes).
    batch = 8
    obs = jax.random.normal(k_obs, (batch, obs_dim), jnp.float32)
    action = jax.block_until_ready(finite_horizon_policy_forward(obs, params, virtual_t=1.0))
    ref = _reference_forward(obs, params, virtual_t=1.0)
    assert action.shape == (batch, act_dim)
    assert action.dtype == jnp.float32
    assert jnp.allclose(action, ref, atol=2e-4, rtol=2e-4), (action, ref)

    # Case 2: larger batch exercising the multi-step grid + ragged padding.
    batch2 = 1500
    obs2 = jax.random.normal(k_obs2, (batch2, obs_dim), jnp.float32)
    action2 = jax.block_until_ready(finite_horizon_policy_forward(obs2, params, virtual_t=1.0))
    ref2 = _reference_forward(obs2, params, virtual_t=1.0)
    assert action2.shape == (batch2, act_dim)
    assert jnp.allclose(action2, ref2, atol=2e-4, rtol=2e-4)

    print("KERNEL_OK")
</pallas_src>

<mosaic_0001>
module attributes {stable_mosaic.version = 11 : i64} {
  func.func @_policy_kernel(%arg0: i32, %arg1: memref<8x128xf32, #tpu.memory_space<vmem>>, %arg2: memref<16x8xf32, #tpu.memory_space<vmem>>, %arg3: memref<16x1xf32, #tpu.memory_space<vmem>>, %arg4: memref<16x1xf32, #tpu.memory_space<vmem>>, %arg5: memref<4x16xf32, #tpu.memory_space<vmem>>, %arg6: memref<4x1xf32, #tpu.memory_space<vmem>>, %arg7: memref<4x1xf32, #tpu.memory_space<vmem>>, %arg8: memref<4x1xf32, #tpu.memory_space<vmem>>, %arg9: memref<4x128xf32, #tpu.memory_space<vmem>>) attributes {dimension_semantics = [#tpu.dimension_semantics<parallel>], iteration_bounds = array<i64: 1>, scalar_prefetch = 0 : i64, scratch_operands = 0 : i64, tpu.core_type = #tpu.core_type<tc>, window_params = [{transform_indices = @transform_0, window_bounds = array<i64: 8, 128>}, {pipeline_mode = #tpu.pipeline_mode<synchronous>, transform_indices = @transform_1, window_bounds = array<i64: 16, 8>}, {pipeline_mode = #tpu.pipeline_mode<synchronous>, transform_indices = @transform_2, window_bounds = array<i64: 16, 1>}, {pipeline_mode = #tpu.pipeline_mode<synchronous>, transform_indices = @transform_3, window_bounds = array<i64: 16, 1>}, {pipeline_mode = #tpu.pipeline_mode<synchronous>, transform_indices = @transform_4, window_bounds = array<i64: 4, 16>}, {pipeline_mode = #tpu.pipeline_mode<synchronous>, transform_indices = @transform_5, window_bounds = array<i64: 4, 1>}, {pipeline_mode = #tpu.pipeline_mode<synchronous>, transform_indices = @transform_6, window_bounds = array<i64: 4, 1>}, {pipeline_mode = #tpu.pipeline_mode<synchronous>, transform_indices = @transform_7, window_bounds = array<i64: 4, 1>}, {transform_indices = @transform_8, window_bounds = array<i64: 4, 128>}]} {
    %c0 = arith.constant 0 : index
    %c0_0 = arith.constant 0 : index
    %0 = vector.load %arg1[%c0, %c0_0] : memref<8x128xf32, #tpu.memory_space<vmem>>, vector<8x128xf32>
    %1 = arith.mulf %0, %0 : vector<8x128xf32>
    %cst = arith.constant dense<0.000000e+00> : vector<128xf32>
    %2 = vector.multi_reduction <add>, %1, %cst [0] : vector<8x128xf32> to vector<128xf32>
    %3 = vector.shape_cast %2 : vector<128xf32> to vector<1x128xf32>
    %c0_1 = arith.constant 0 : index
    %c0_2 = arith.constant 0 : index
    %4 = vector.load %arg2[%c0_1, %c0_2] : memref<16x8xf32, #tpu.memory_space<vmem>>, vector<16x8xf32>
    %cst_3 = arith.constant dense<0.000000e+00> : vector<16x128xf32>
    %5 = tpu.matmul %4, %0, %cst_3 {dimension_numbers = #tpu.dot_dimension_numbers<[1], [0], [0], [1], [0, 0, 1, 1], [], []>} : vector<16x8xf32>, vector<8x128xf32>, vector<16x128xf32> -> vector<16x128xf32>
    %c0_4 = arith.constant 0 : index
    %c0_5 = arith.constant 0 : index
    %6 = vector.load %arg3[%c0_4, %c0_5] : memref<16x1xf32, #tpu.memory_space<vmem>>, vector<16x1xf32>
    %7 = vector.broadcast %3 : vector<1x128xf32> to vector<16x128xf32>
    %8 = vector.broadcast %6 : vector<16x1xf32> to vector<16x128xf32>
    %9 = arith.addf %7, %8 : vector<16x128xf32>
    %cst_6 = arith.constant 2.000000e+00 : f32
    %10 = vector.broadcast %cst_6 : f32 to vector<16x128xf32>
    %11 = arith.mulf %10, %5 : vector<16x128xf32>
    %12 = arith.subf %9, %11 : vector<16x128xf32>
    %cst_7 = arith.constant 0.000000e+00 : f32
    %13 = vector.broadcast %cst_7 : f32 to vector<16x128xf32>
    %14 = arith.maximumf %12, %13 : vector<16x128xf32>
    %c0_8 = arith.constant 0 : index
    %c0_9 = arith.constant 0 : index
    %15 = vector.load %arg4[%c0_8, %c0_9] : memref<16x1xf32, #tpu.memory_space<vmem>>, vector<16x1xf32>
    %16 = vector.broadcast %15 : vector<16x1xf32> to vector<16x128xf32>
    %17 = arith.mulf %14, %16 : vector<16x128xf32>
    %18 = math.exp %17 : vector<16x128xf32>
    %c0_10 = arith.constant 0 : index
    %c0_11 = arith.constant 0 : index
    %19 = vector.load %arg5[%c0_10, %c0_11] : memref<4x16xf32, #tpu.memory_space<vmem>>, vector<4x16xf32>
    %cst_12 = arith.constant dense<0.000000e+00> : vector<4x128xf32>
    %20 = tpu.matmul %19, %18, %cst_12 {dimension_numbers = #tpu.dot_dimension_numbers<[1], [0], [0], [1], [0, 0, 1, 1], [], []>} : vector<4x16xf32>, vector<16x128xf32>, vector<4x128xf32> -> vector<4x128xf32>
    %c0_13 = arith.constant 0 : index
    %c0_14 = arith.constant 0 : index
    %21 = vector.load %arg6[%c0_13, %c0_14] : memref<4x1xf32, #tpu.memory_space<vmem>>, vector<4x1xf32>
    %22 = vector.broadcast %21 : vector<4x1xf32> to vector<4x128xf32>
    %23 = arith.addf %20, %22 : vector<4x128xf32>
    %c0_15 = arith.constant 0 : index
    %c0_16 = arith.constant 0 : index
    %24 = vector.load %arg7[%c0_15, %c0_16] : memref<4x1xf32, #tpu.memory_space<vmem>>, vector<4x1xf32>
    %25 = math.tanh %23 : vector<4x128xf32>
    %26 = vector.broadcast %24 : vector<4x1xf32> to vector<4x128xf32>
    %27 = arith.mulf %26, %25 : vector<4x128xf32>
    %c0_17 = arith.constant 0 : index
    %c0_18 = arith.constant 0 : index
    %28 = vector.load %arg8[%c0_17, %c0_18] : memref<4x1xf32, #tpu.memory_space<vmem>>, vector<4x1xf32>
    %29 = vector.broadcast %28 : vector<4x1xf32> to vector<4x128xf32>
    %30 = arith.addf %27, %29 : vector<4x128xf32>
    %c0_19 = arith.constant 0 : index
    %c0_20 = arith.constant 0 : index
    %31 = vector.load %arg9[%c0_19, %c0_20] : memref<4x128xf32, #tpu.memory_space<vmem>>, vector<4x128xf32>
    tpu.vector_store %arg9[%c0_19, %c0_20], %30 {strides = array<i32>} : memref<4x128xf32, #tpu.memory_space<vmem>>, vector<4x128xf32>,
    return
  }
  func.func @transform_0(%arg0: i32) -> (i32, i32) {
    %c0_i32 = arith.constant 0 : i32
    %c0_i32_0 = arith.constant 0 : i32
    return %c0_i32, %arg0 : i32, i32
  }
  func.func @transform_1(%arg0: i32) -> (i32, i32) {
    %c0_i32 = arith.constant 0 : i32
    %c0_i32_0 = arith.constant 0 : i32
    %c0_i32_1 = arith.constant 0 : i32
    return %c0_i32, %c0_i32_0 : i32, i32
  }
  func.func @transform_2(%arg0: i32) -> (i32, i32) {
    %c0_i32 = arith.constant 0 : i32
    %c0_i32_0 = arith.constant 0 : i32
    %c0_i32_1 = arith.constant 0 : i32
    return %c0_i32, %c0_i32_0 : i32, i32
  }
  func.func @transform_3(%arg0: i32) -> (i32, i32) {
    %c0_i32 = arith.constant 0 : i32
    %c0_i32_0 = arith.constant 0 : i32
    %c0_i32_1 = arith.constant 0 : i32
    return %c0_i32, %c0_i32_0 : i32, i32
  }
  func.func @transform_4(%arg0: i32) -> (i32, i32) {
    %c0_i32 = arith.constant 0 : i32
    %c0_i32_0 = arith.constant 0 : i32
    %c0_i32_1 = arith.constant 0 : i32
    return %c0_i32, %c0_i32_0 : i32, i32
  }
  func.func @transform_5(%arg0: i32) -> (i32, i32) {
    %c0_i32 = arith.constant 0 : i32
    %c0_i32_0 = arith.constant 0 : i32
    %c0_i32_1 = arith.constant 0 : i32
    return %c0_i32, %c0_i32_0 : i32, i32
  }
  func.func @transform_6(%arg0: i32) -> (i32, i32) {
    %c0_i32 = arith.constant 0 : i32
    %c0_i32_0 = arith.constant 0 : i32
    %c0_i32_1 = arith.constant 0 : i32
    return %c0_i32, %c0_i32_0 : i32, i32
  }
  func.func @transform_7(%arg0: i32) -> (i32, i32) {
    %c0_i32 = arith.constant 0 : i32
    %c0_i32_0 = arith.constant 0 : i32
    %c0_i32_1 = arith.constant 0 : i32
    return %c0_i32, %c0_i32_0 : i32, i32
  }
  func.func @transform_8(%arg0: i32) -> (i32, i32) {
    %c0_i32 = arith.constant 0 : i32
    %c0_i32_0 = arith.constant 0 : i32
    return %c0_i32, %arg0 : i32, i32
  }
}

</mosaic_0001>

<llo_original>
// kernel: tpu_custom_call.1
$region0: #{tpu_custom_call.1}
  #allocation0 [shape = 'u32[]', space=smem, size = 0x4, offset = 0x4, fixed_abs, tag = 'smem constant byte address 0x4 - core index']
  #allocation1 [shape = 'u32[144,128]{1,0:T(1,128)}', space=vmem, size = 0x12000, scoped, tag = 'internal scratch']
  %s0 = inlined_call_operand.vmem [shape: f32[8,128], index: 0, kind: input, shape index: {}]
  %s1 = inlined_call_operand.vmem [shape: f32[16,8], index: 1, kind: input, shape index: {}]
  %s2 = inlined_call_operand.vmem [shape: f32[16,1], index: 2, kind: input, shape index: {}]
  %s3 = inlined_call_operand.vmem [shape: f32[16,1], index: 3, kind: input, shape index: {}]
  %s4 = inlined_call_operand.vmem [shape: f32[4,16], index: 4, kind: input, shape index: {}]
  %s5 = inlined_call_operand.vmem [shape: f32[4,1], index: 5, kind: input, shape index: {}]
  %s6 = inlined_call_operand.vmem [shape: f32[4,1], index: 6, kind: input, shape index: {}]
  %s7 = inlined_call_operand.vmem [shape: f32[4,1], index: 7, kind: input, shape index: {}]
  %s8 = inlined_call_operand.hbm [shape: f32[4,128], index: 8, kind: output, shape index: {}]
  %s9 = sld [smem:[#allocation0]]
  $region42: #{tpu_custom_call.1} parent=0
    _
  %s11 = ssub.s32 1, %s9
  %s12 = scalar_select 0, %s11, %s9
  $region1: #{tpu_custom_call.1} parent=0
    #allocation2 [shape = 'u8[2048]{0}', space=vmem, size = 0x800, scoped, tag = 'output window, operand 0, single buffered']
    #allocation3 [shape = 's32[1]{0}', space=sflag, size = 0x4, scoped, tag = 'scoped memory for tpu_custom_call.1']
    %13 = vsyncpa [#allocation3], 0
    // Predicated region
    $region2: #{tpu_custom_call.1} parent=1 // pred_check
      _
    $region3: #{tpu_custom_call.1} parent=1 // pred_check_branch
      %15 = sbr.rel (0) target = $region5
    $region4: #{tpu_custom_call.1} parent=1 // pred_region
      _
    $region5: #{tpu_custom_call.1} parent=1 // pred_fallthru
      _
    // Predicated region
    $region6: #{tpu_custom_call.1} parent=1 // pred_check
      _
    $region7: #{tpu_custom_call.1} parent=1 // pred_check_branch
      %17 = sbr.rel (0) target = $region9
    $region8: #{tpu_custom_call.1} parent=1 // pred_region
      _
    $region9: #{tpu_custom_call.1} parent=1 // pred_fallthru
      _
    // Predicated region
    $region10: #{tpu_custom_call.1} parent=1 // pred_check
      _
    $region11: #{tpu_custom_call.1} parent=1 // pred_check_branch
      %19 = sbr.rel (0) target = $region13
    $region12: #{tpu_custom_call.1} parent=1 // pred_region
      _
    $region13: #{tpu_custom_call.1} parent=1 // pred_fallthru
      _
    // Predicated region
    $region14: #{tpu_custom_call.1} parent=1 // pred_check
      _
    $region15: #{tpu_custom_call.1} parent=1 // pred_check_branch
      %21 = sbr.rel (0) target = $region17
    $region16: #{tpu_custom_call.1} parent=1 // pred_region
      _
    $region17: #{tpu_custom_call.1} parent=1 // pred_fallthru
      _
    // Predicated region
    $region18: #{tpu_custom_call.1} parent=1 // pred_check
      _
    $region19: #{tpu_custom_call.1} parent=1 // pred_check_branch
      %23 = sbr.rel (0) target = $region21
    $region20: #{tpu_custom_call.1} parent=1 // pred_region
      _
    $region21: #{tpu_custom_call.1} parent=1 // pred_fallthru
      _
    // Predicated region
    $region22: #{tpu_custom_call.1} parent=1 // pred_check
      _
    $region23: #{tpu_custom_call.1} parent=1 // pred_check_branch
      %25 = sbr.rel (0) target = $region25
    $region24: #{tpu_custom_call.1} parent=1 // pred_region
      _
    $region25: #{tpu_custom_call.1} parent=1 // pred_fallthru
      _
    // Predicated region
    $region26: #{tpu_custom_call.1} parent=1 // pred_check
      _
    $region27: #{tpu_custom_call.1} parent=1 // pred_check_branch
      %27 = sbr.rel (0) target = $region29
    $region28: #{tpu_custom_call.1} parent=1 // pred_region
      _
    $region29: #{tpu_custom_call.1} parent=1 // pred_fallthru
      _
    // Predicated region
    $region30: #{tpu_custom_call.1} parent=1 // pred_check
      _
    $region31: #{tpu_custom_call.1} parent=1 // pred_check_branch
      %29 = sbr.rel (0) target = $region33
    $region32: #{tpu_custom_call.1} parent=1 // pred_region
      _
    $region33: #{tpu_custom_call.1} parent=1 // pred_fallthru
      _
    %v30 = vld [vmem:[%s0] sm:$0xff]
    %v31 = vmul.f32 %v30, %v30
    %v32 = vrot.slane %v31, 4
    %v33 = vadd.f32 %v31, %v32
    %v34 = vrot.slane %v33, 2
    %v35 = vadd.f32 %v33, %v34
    %v36 = vrot.slane %v35, 1
    %v37 = vadd.f32 %v35, %v36
    %v38 = vld [vmem:[%s1] sm:$0xff]
    %v39 = vld [vmem:[%s1 + $0x8] sm:$0xff]
    %vm40 = vcmask 64512
    %v42 = vsel %vm40, %v38, 0
    %v45 = vsel %vm40, %v39, 0
    %47 = vmatprep.subr.mxu0 0.0
    %48 = vmatpush1.msra.mxu0 0.0
    %49 = vmatprep.subr.mxu0 0.0
    %50 = vmatpush1.msra.mxu0 0.0
    %51 = vmatprep.subr.mxu0 0.0
    %52 = vmatpush1.msra.mxu0 0.0
    %53 = vmatprep.subr.mxu0 0.0
    %54 = vmatpush1.msra.mxu0 0.0
    %55 = vmatprep.subr.mxu0 0.0
    %56 = vmatpush1.msra.mxu0 0.0
    %57 = vmatprep.subr.mxu0 0.0
    %58 = vmatpush1.msra.mxu0 0.0
    %59 = vmatprep.subr.mxu0 0.0
    %60 = vmatpush1.msra.mxu0 0.0
    %61 = vmatprep.subr.mxu0 0.0
    %62 = vmatpush1.msra.mxu0 0.0
    %63 = vmatprep.subr.mxu0 0.0
    %64 = vmatpush1.msra.mxu0 0.0
    %65 = vmatprep.subr.mxu0 0.0
    %66 = vmatpush1.msra.mxu0 0.0
    %67 = vmatprep.subr.mxu0 0.0
    %68 = vmatpush1.msra.mxu0 0.0
    %69 = vmatprep.subr.mxu0 0.0
    %70 = vmatpush1.msra.mxu0 0.0
    %71 = vmatprep.subr.mxu0 0.0
    %72 = vmatpush1.msra.mxu0 0.0
    %73 = vmatprep.subr.mxu0 0.0
    %74 = vmatpush1.msra.mxu0 0.0
    %75 = vmatprep.subr.mxu0 0.0
    %76 = vmatpush1.msra.mxu0 0.0
    %77 = vmatprep.subr.mxu0 0.0
    %78 = vmatpush1.msra.mxu0 %v30
    %79 = vmatprep.subr.mxu0 0.0
    %80 = vmatpush2.msra.mxu0 0.0
    %81 = vmatprep.subr.mxu0 0.0
    %82 = vmatpush2.msra.mxu0 0.0
    %83 = vmatprep.subr.mxu0 0.0
    %84 = vmatpush2.msra.mxu0 0.0
    %85 = vmatprep.subr.mxu0 0.0
    %86 = vmatpush2.msra.mxu0 0.0
    %87 = vmatprep.subr.mxu0 0.0
    %88 = vmatpush2.msra.mxu0 0.0
    %89 = vmatprep.subr.mxu0 0.0
    %90 = vmatpush2.msra.mxu0 0.0
    %91 = vmatprep.subr.mxu0 0.0
    %92 = vmatpush2.msra.mxu0 0.0
    %93 = vmatprep.subr.mxu0 0.0
    %94 = vmatpush2.msra.mxu0 0.0
    %95 = vmatprep.subr.mxu0 0.0
    %96 = vmatpush2.msra.mxu0 0.0
    %97 = vmatprep.subr.mxu0 0.0
    %98 = vmatpush2.msra.mxu0 0.0
    %99 = vmatprep.subr.mxu0 0.0
    %100 = vmatpush2.msra.mxu0 0.0
    %101 = vmatprep.subr.mxu0 0.0
    %102 = vmatpush2.msra.mxu0 0.0
    %103 = vmatprep.subr.mxu0 0.0
    %104 = vmatpush2.msra.mxu0 0.0
    %105 = vmatprep.subr.mxu0 0.0
    %106 = vmatpush2.msra.mxu0 0.0
    %107 = vmatprep.subr.mxu0 0.0
    %108 = vmatpush2.msra.mxu0 0.0
    %109 = vmatprep.subr.mxu0 0.0
    %110 = vmatpush2.msra.mxu0 0.0
    %111 = vmatprep.mubr.f32.mxu0 0.0
    %112 = vmatmul.mubr.f32.gmra.mxu0 %v42
    %v113 = vpop.f32.mrf.mxu0
    %v114 = vadd.f32 0.0, %v113
    %v115 = vpop.f32.mrf.mxu0
    %116 = vmatprep.mubr.f32.mxu0 0.0
    %117 = vmatmul.mubr.f32.gmra.mxu0 %v45
    %v118 = vpop.f32.mrf.mxu0
    %v119 = vadd.f32 0.0, %v118
    %v120 = vpop.f32.mrf.mxu0
    %121 = vdwg.mxu0
    %v122 = vld [vmem:[%s2] sm:$0xff]
    %v123 = vld [vmem:[%s2 + $0x8] sm:$0xff]
    %125 = vset.pattern.permute.xlu0 0
    %126 = vperm.xlu0 %125, %v122
    %v127 = vpop.permute.xlu0 %126
    %130 = vset.pattern.permute.xlu0 0
    %131 = vperm.xlu0 %130, %v123
    %v132 = vpop.permute.xlu0 %131
    %v134 = vadd.f32 %v37, %v127
    %v135 = vadd.f32 %v37, %v132
    %v136 = vmul.f32 %v114, 2.0
    %v137 = vmul.f32 %v119, 2.0
    %v138 = vsub.f32 %v134, %v136
    %v139 = vsub.f32 %v135, %v137
    %v140 = vmax.f32 %v138, 0.0
    %v141 = vmax.f32 %v139, 0.0
    %v142 = vld [vmem:[%s3] sm:$0xff]
    %v143 = vld [vmem:[%s3 + $0x8] sm:$0xff]
    %145 = vset.pattern.permute.xlu0 0
    %146 = vperm.xlu0 %145, %v142
    %v147 = vpop.permute.xlu0 %146
    %150 = vset.pattern.permute.xlu0 0
    %151 = vperm.xlu0 %150, %v143
    %v152 = vpop.permute.xlu0 %151
    %v154 = vmul.f32 %v140, %v147
    %v155 = vmul.f32 %v141, %v152
    %v156 = vmul.f32 %v154, 1.442695
    %v157 = vpow.pop %v156
    %v158 = vmul.f32 %v155, 1.442695
    %v159 = vpow.pop %v158
    %v160 = vld [vmem:[%s4] sm:$0xf]
    %v161 = vld [vmem:[%s5] sm:$0xf]
    %163 = vset.pattern.permute.xlu0 0
    %164 = vperm.xlu0 %163, %v161
    %v165 = vpop.permute.xlu0 %164
    %vm167 = vcmask 130048
    %v169 = vsel %vm167, %v160, 0
    %171 = vmatprep.subr.mxu0 0.0
    %172 = vmatpush1.msra.mxu0 0.0
    %173 = vmatprep.subr.mxu0 0.0
    %174 = vmatpush1.msra.mxu0 0.0
    %175 = vmatprep.subr.mxu0 0.0
    %176 = vmatpush1.msra.mxu0 0.0
    %177 = vmatprep.subr.mxu0 0.0
    %178 = vmatpush1.msra.mxu0 0.0
    %179 = vmatprep.subr.mxu0 0.0
    %180 = vmatpush1.msra.mxu0 0.0
    %181 = vmatprep.subr.mxu0 0.0
    %182 = vmatpush1.msra.mxu0 0.0
    %183 = vmatprep.subr.mxu0 0.0
    %184 = vmatpush1.msra.mxu0 0.0
    %185 = vmatprep.subr.mxu0 0.0
    %186 = vmatpush1.msra.mxu0 0.0
    %187 = vmatprep.subr.mxu0 0.0
    %188 = vmatpush1.msra.mxu0 0.0
    %189 = vmatprep.subr.mxu0 0.0
    %190 = vmatpush1.msra.mxu0 0.0
    %191 = vmatprep.subr.mxu0 0.0
    %192 = vmatpush1.msra.mxu0 0.0
    %193 = vmatprep.subr.mxu0 0.0
    %194 = vmatpush1.msra.mxu0 0.0
    %195 = vmatprep.subr.mxu0 0.0
    %196 = vmatpush1.msra.mxu0 0.0
    %197 = vmatprep.subr.mxu0 0.0
    %198 = vmatpush1.msra.mxu0 0.0
    %199 = vmatprep.subr.mxu0 0.0
    %200 = vmatpush1.msra.mxu0 %v159
    %201 = vmatprep.subr.mxu0 0.0
    %202 = vmatpush1.msra.mxu0 %v157
    %203 = vmatprep.subr.mxu0 0.0
    %204 = vmatpush2.msra.mxu0 0.0
    %205 = vmatprep.subr.mxu0 0.0
    %206 = vmatpush2.msra.mxu0 0.0
    %207 = vmatprep.subr.mxu0 0.0
    %208 = vmatpush2.msra.mxu0 0.0
    %209 = vmatprep.subr.mxu0 0.0
    %210 = vmatpush2.msra.mxu0 0.0
    %211 = vmatprep.subr.mxu0 0.0
    %212 = vmatpush2.msra.mxu0 0.0
    %213 = vmatprep.subr.mxu0 0.0
    %214 = vmatpush2.msra.mxu0 0.0
    %215 = vmatprep.subr.mxu0 0.0
    %216 = vmatpush2.msra.mxu0 0.0
    %217 = vmatprep.subr.mxu0 0.0
    %218 = vmatpush2.msra.mxu0 0.0
    %219 = vmatprep.subr.mxu0 0.0
    %220 = vmatpush2.msra.mxu0 0.0
    %221 = vmatprep.subr.mxu0 0.0
    %222 = vmatpush2.msra.mxu0 0.0
    %223 = vmatprep.subr.mxu0 0.0
    %224 = vmatpush2.msra.mxu0 0.0
    %225 = vmatprep.subr.mxu0 0.0
    %226 = vmatpush2.msra.mxu0 0.0
    %227 = vmatprep.subr.mxu0 0.0
    %228 = vmatpush2.msra.mxu0 0.0
    %229 = vmatprep.subr.mxu0 0.0
    %230 = vmatpush2.msra.mxu0 0.0
    %231 = vmatprep.subr.mxu0 0.0
    %232 = vmatpush2.msra.mxu0 0.0
    %233 = vmatprep.subr.mxu0 0.0
    %234 = vmatpush2.msra.mxu0 0.0
    %235 = vmatprep.mubr.f32.mxu0 0.0
    %236 = vmatmul.mubr.f32.gmra.mxu0 %v169
    %v237 = vpop.f32.mrf.mxu0
    %v238 = vadd.f32 %v165, %v237
    %v239 = vpop.f32.mrf.mxu0
    %240 = vdwg.mxu0
    %v241 = vld [vmem:[%s6] sm:$0xf]
    %v242 = vtanh.pop %v238
    %244 = vset.pattern.permute.xlu0 0
    %245 = vperm.xlu0 %244, %v241
    %v246 = vpop.permute.xlu0 %245
    %v248 = vmul.f32 %v246, %v242
    %v249 = vld [vmem:[%s7] sm:$0xf]
    %251 = vset.pattern.permute.xlu0 0
    %252 = vperm.xlu0 %251, %v249
    %v253 = vpop.permute.xlu0 %252
    %v255 = vadd.f32 %v248, %v253
    %256 = vst [vmem:[#allocation2] sm:$0xf] %v255
    // Predicated region
    $region34: #{tpu_custom_call.1} parent=1 // pred_check
      _
    $region35: #{tpu_custom_call.1} parent=1 // pred_check_branch
      %258 = sbr.rel (0) target = $region37
    $region36: #{tpu_custom_call.1} parent=1 // pred_region
      %s260 = ssub.s32 64, 64
      %261 = vsyncadd [#allocation3], %s260
      %s263 = sshll.u32 [#allocation2], 4
      %s264 = int_to_ptr.vmem [resolvable:$true] %s263
      %266 = dma.vmem_to_hbm [thread:$0]  %s264, 64, %s8, [#allocation3]
    $region37: #{tpu_custom_call.1} parent=1 // pred_fallthru
      _
    // Predicated region
    $region38: #{tpu_custom_call.1} parent=1 // pred_check
      _
    $region39: #{tpu_custom_call.1} parent=1 // pred_check_branch
      %268 = sbr.rel (0) target = $region41
    $region40: #{tpu_custom_call.1} parent=1 // pred_region
      %269 = dma.done [#allocation3], 64
    $region41: #{tpu_custom_call.1} parent=1 // pred_fallthru
      _
    %270 = vsyncpa [#allocation3], 1

</llo_original>
